<compile_context>
chip_gen: v6e
topology: v6e:2x2x1
jax: 0.10.0
libtpu: 0.0.40
codegen_flags: <defaults>
</compile_context>

<pallas_src>
import jax
import jax.numpy as jnp
from jax.experimental import pallas as pl
from jax.experimental.pallas import tpu as pltpu

BN_EPS = 1e-5
PAD = 128  # lane-dense feature padding (vreg lane width)


def batch_net_kernel(x_ref, w_ref, p_ref, o_ref):
    """x_ref: (B, PAD) f32   w_ref: (6, PAD, PAD) bf16   p_ref: (11, PAD) f32
    o_ref: (B, PAD) f32

    p_ref rows: 0..4 = gamma_1..5, 5..9 = beta_1..5, 10 = bias_6.
    Layers 1..5: Linear (bias canceled by train-mode BN) -> BN -> ReLU.
    Layer 6:     Linear + bias.
    """
    h = x_ref[...]                        # (B, PAD) f32
    p = p_ref[...]                        # (11, PAD) f32, tiny, load once
    inv_b = jnp.float32(1.0 / h.shape[0])

    for i in range(5):
        # bf16 x bf16 -> f32 accumulate: single MXU pass per matmul.
        z = jnp.dot(h.astype(jnp.bfloat16), w_ref[i],
                    preferred_element_type=jnp.float32)
        # Two-pass batch statistics (biased variance, as PyTorch forward uses).
        mean = jnp.sum(z, axis=0, keepdims=True) * inv_b
        d = z - mean
        var = jnp.sum(d * d, axis=0, keepdims=True) * inv_b
        gamma = p[i:i + 1, :]
        beta = p[5 + i:6 + i, :]
        # Folded normalize + affine; rsqrt goes to the EUP (free slot).
        scale = gamma * jax.lax.rsqrt(var + BN_EPS)
        h = jnp.maximum(d * scale + beta, 0.0)        # ReLU

    out = jnp.dot(h.astype(jnp.bfloat16), w_ref[5],
                  preferred_element_type=jnp.float32) + p[10:11, :]
    o_ref[...] = out.astype(o_ref.dtype)


def pack_params(params, dims):
    """Pack the 26 raw parameter tensors into 2 lane-dense slabs.  Called ONCE
    at model-load time, not per forward call."""
    ws, gammas, betas = [], [], []
    b6_pad = None
    idx = 0
    for i in range(6):
        w, b = params[idx], params[idx + 1]
        idx += 2
        wp = jnp.zeros((PAD, PAD), jnp.bfloat16).at[
            :w.shape[0], :w.shape[1]].set(w.astype(jnp.bfloat16))
        ws.append(wp)
        if i < 5:
            g, be = params[idx], params[idx + 1]
            idx += 2
            # gamma pad = 1, beta pad = 0 -> padded BN columns stay exactly 0.
            gammas.append(jnp.ones((1, PAD), jnp.float32).at[:, :g.shape[1]].set(g))
            betas.append(jnp.zeros((1, PAD), jnp.float32).at[:, :be.shape[1]].set(be))
            # b (layers 1..5) intentionally dropped: canceled by BN mean subtraction.
        else:
            b6_pad = jnp.zeros((1, PAD), jnp.float32).at[:, :b.shape[1]].set(b)

    w_stack = jnp.stack(ws, axis=0)                               # (6, PAD, PAD) bf16
    p_stack = jnp.concatenate(gammas + betas + [b6_pad], axis=0)  # (11, PAD) f32
    return jax.device_put(w_stack), jax.device_put(p_stack)


def make_batch_net(params, dims):
    """Pack params once; return a jitted per-call forward that only pads x."""
    w_stack, p_stack = pack_params(params, dims)
    in_dim, out_dim = dims[0], dims[-1]
    vmem = pl.BlockSpec(memory_space=pltpu.MemorySpace.VMEM)

    def _forward(x):
        batch = x.shape[0]
        x_pad = jnp.zeros((batch, PAD), jnp.float32).at[:, :in_dim].set(
            x.astype(jnp.float32))

        cost = pl.CostEstimate(
            flops=2 * batch * PAD * PAD * 6,            # padded MXU work actually done
            transcendentals=5 * PAD,                    # rsqrt per feature per BN layer
            bytes_accessed=(2 * w_stack.size            # bf16 weight slab
                            + 4 * (x_pad.size + p_stack.size + batch * PAD)),
        )

        out_pad = pl.pallas_call(
            batch_net_kernel,
            out_shape=jax.ShapeDtypeStruct((batch, PAD), jnp.float32),
            in_specs=[vmem, vmem, vmem],
            out_specs=vmem,
            cost_estimate=cost,
        )(x_pad, w_stack, p_stack)
        return out_pad[:, :out_dim]

    return jax.jit(_forward)


def make_params(key, in_dim, h1, h2, h3, h4, h5, out_dim):
    """Deterministic synthetic parameters (shapes follow Batch_Net.__init__)."""
    dims = [in_dim, h1, h2, h3, h4, h5, out_dim]
    params = []
    keys = jax.random.split(key, 2 * 6)
    for i in range(6):
        fan_in, fan_out = dims[i], dims[i + 1]
        w = jax.random.normal(keys[2 * i], (fan_in, fan_out), jnp.float32) * 0.1
        b = jax.random.normal(keys[2 * i + 1], (1, fan_out), jnp.float32) * 0.05
        params.append(w)
        params.append(b)
        if i < 5:  # BatchNorm affine params for layers 1..5
            gamma = 1.0 + 0.1 * jax.random.normal(
                jax.random.fold_in(keys[2 * i], 7), (1, fan_out), jnp.float32)
            beta = 0.1 * jax.random.normal(
                jax.random.fold_in(keys[2 * i + 1], 11), (1, fan_out), jnp.float32)
            params.append(gamma)
            params.append(beta)
    return params


def reference_forward(x, params):
    """Pure-JAX f32 reference with exact PyTorch forward semantics (biases included)."""
    p = list(params)
    h = x.astype(jnp.float32)
    idx = 0
    for i in range(6):
        w, b = p[idx], p[idx + 1]
        idx += 2
        z = h @ w + b
        if i < 5:
            g, be = p[idx], p[idx + 1]
            idx += 2
            mean = jnp.mean(z, axis=0, keepdims=True)
            var = jnp.mean((z - mean) ** 2, axis=0, keepdims=True)
            z = (z - mean) / jnp.sqrt(var + BN_EPS) * g + be
            z = jnp.maximum(z, 0.0)
        h = z
    return h


if __name__ == "__main__":
    # Small shapes consistent with the module's __init__ signature.
    # (For real serving, feed batches >= 128 rows so the MXU height is filled.)
    batch = 8
    in_dim, h1, h2, h3, h4, h5, out_dim = 32, 64, 64, 48, 48, 32, 16
    dims = [in_dim, h1, h2, h3, h4, h5, out_dim]

    key = jax.random.PRNGKey(0)
    kx, kp = jax.random.split(key)
    x = jax.random.normal(kx, (batch, in_dim), jnp.float32)
    params = make_params(kp, in_dim, h1, h2, h3, h4, h5, out_dim)

    forward = make_batch_net(params, dims)   # packs params once (model load)
    out = jax.block_until_ready(forward(x))

    ref = reference_forward(x, params)
    assert out.shape == (batch, out_dim), out.shape
    assert bool(jnp.all(jnp.isfinite(out))), "non-finite output"
    # Tolerance reflects bf16 matmul operands (f32 accumulation) vs f32 reference.
    max_err = float(jnp.max(jnp.abs(out - ref)))
    assert jnp.allclose(out, ref, atol=5e-2, rtol=5e-2), max_err

    print("KERNEL_OK")
</pallas_src>

<mosaic_0001>
module attributes {stable_mosaic.version = 11 : i64} {
  func.func @batch_net_kernel(%arg0: memref<8x128xf32, #tpu.memory_space<vmem>>, %arg1: memref<6x128x128xbf16, #tpu.memory_space<vmem>>, %arg2: memref<11x128xf32, #tpu.memory_space<vmem>>, %arg3: memref<8x128xf32, #tpu.memory_space<vmem>>) attributes {dimension_semantics = [], scalar_prefetch = 0 : i64, scratch_operands = 0 : i64, tpu.core_type = #tpu.core_type<tc>} {
    %c0 = arith.constant 0 : index
    %c0_0 = arith.constant 0 : index
    %0 = vector.load %arg0[%c0, %c0_0] : memref<8x128xf32, #tpu.memory_space<vmem>>, vector<8x128xf32>
    %c0_1 = arith.constant 0 : index
    %c0_2 = arith.constant 0 : index
    %1 = vector.load %arg2[%c0_1, %c0_2] : memref<11x128xf32, #tpu.memory_space<vmem>>, vector<11x128xf32>
    %2 = arith.truncf %0 : vector<8x128xf32> to vector<8x128xbf16>
    %c0_3 = arith.constant 0 : index
    %c0_4 = arith.constant 0 : index
    %c0_5 = arith.constant 0 : index
    %3 = vector.load %arg1[%c0_3, %c0_4, %c0_5] : memref<6x128x128xbf16, #tpu.memory_space<vmem>>, vector<1x128x128xbf16>
    %4 = vector.shape_cast %3 : vector<1x128x128xbf16> to vector<128x128xbf16>
    %cst = arith.constant dense<0.000000e+00> : vector<8x128xf32>
    %5 = tpu.matmul %2, %4, %cst {dimension_numbers = #tpu.dot_dimension_numbers<[1], [0], [0], [1], [0, 0, 1, 1], [], []>} : vector<8x128xbf16>, vector<128x128xbf16>, vector<8x128xf32> -> vector<8x128xf32>
    %cst_6 = arith.constant dense<0.000000e+00> : vector<128xf32>
    %6 = vector.multi_reduction <add>, %5, %cst_6 [0] : vector<8x128xf32> to vector<128xf32>
    %7 = vector.shape_cast %6 : vector<128xf32> to vector<1x128xf32>
    %cst_7 = arith.constant 1.250000e-01 : f32
    %8 = vector.broadcast %cst_7 : f32 to vector<1x128xf32>
    %9 = arith.mulf %7, %8 : vector<1x128xf32>
    %10 = vector.broadcast %9 : vector<1x128xf32> to vector<8x128xf32>
    %11 = arith.subf %5, %10 : vector<8x128xf32>
    %12 = arith.mulf %11, %11 : vector<8x128xf32>
    %cst_8 = arith.constant dense<0.000000e+00> : vector<128xf32>
    %13 = vector.multi_reduction <add>, %12, %cst_8 [0] : vector<8x128xf32> to vector<128xf32>
    %14 = vector.shape_cast %13 : vector<128xf32> to vector<1x128xf32>
    %cst_9 = arith.constant 1.250000e-01 : f32
    %15 = vector.broadcast %cst_9 : f32 to vector<1x128xf32>
    %16 = arith.mulf %14, %15 : vector<1x128xf32>
    %17 = vector.extract_strided_slice %1 {offsets = [0, 0], sizes = [1, 128], strides = [1, 1]} : vector<11x128xf32> to vector<1x128xf32>
    %18 = vector.extract_strided_slice %1 {offsets = [5, 0], sizes = [1, 128], strides = [1, 1]} : vector<11x128xf32> to vector<1x128xf32>
    %cst_10 = arith.constant 9.99999974E-6 : f32
    %19 = vector.broadcast %cst_10 : f32 to vector<1x128xf32>
    %20 = arith.addf %16, %19 : vector<1x128xf32>
    %21 = math.rsqrt %20 : vector<1x128xf32>
    %22 = arith.mulf %17, %21 : vector<1x128xf32>
    %23 = vector.broadcast %22 : vector<1x128xf32> to vector<8x128xf32>
    %24 = arith.mulf %11, %23 : vector<8x128xf32>
    %25 = vector.broadcast %18 : vector<1x128xf32> to vector<8x128xf32>
    %26 = arith.addf %24, %25 : vector<8x128xf32>
    %cst_11 = arith.constant 0.000000e+00 : f32
    %27 = vector.broadcast %cst_11 : f32 to vector<8x128xf32>
    %28 = arith.maximumf %26, %27 : vector<8x128xf32>
    %29 = arith.truncf %28 : vector<8x128xf32> to vector<8x128xbf16>
    %c1 = arith.constant 1 : index
    %c0_12 = arith.constant 0 : index
    %c0_13 = arith.constant 0 : index
    %30 = vector.load %arg1[%c1, %c0_12, %c0_13] : memref<6x128x128xbf16, #tpu.memory_space<vmem>>, vector<1x128x128xbf16>
    %31 = vector.shape_cast %30 : vector<1x128x128xbf16> to vector<128x128xbf16>
    %cst_14 = arith.constant dense<0.000000e+00> : vector<8x128xf32>
    %32 = tpu.matmul %29, %31, %cst_14 {dimension_numbers = #tpu.dot_dimension_numbers<[1], [0], [0], [1], [0, 0, 1, 1], [], []>} : vector<8x128xbf16>, vector<128x128xbf16>, vector<8x128xf32> -> vector<8x128xf32>
    %cst_15 = arith.constant dense<0.000000e+00> : vector<128xf32>
    %33 = vector.multi_reduction <add>, %32, %cst_15 [0] : vector<8x128xf32> to vector<128xf32>
    %34 = vector.shape_cast %33 : vector<128xf32> to vector<1x128xf32>
    %cst_16 = arith.constant 1.250000e-01 : f32
    %35 = vector.broadcast %cst_16 : f32 to vector<1x128xf32>
    %36 = arith.mulf %34, %35 : vector<1x128xf32>
    %37 = vector.broadcast %36 : vector<1x128xf32> to vector<8x128xf32>
    %38 = arith.subf %32, %37 : vector<8x128xf32>
    %39 = arith.mulf %38, %38 : vector<8x128xf32>
    %cst_17 = arith.constant dense<0.000000e+00> : vector<128xf32>
    %40 = vector.multi_reduction <add>, %39, %cst_17 [0] : vector<8x128xf32> to vector<128xf32>
    %41 = vector.shape_cast %40 : vector<128xf32> to vector<1x128xf32>
    %cst_18 = arith.constant 1.250000e-01 : f32
    %42 = vector.broadcast %cst_18 : f32 to vector<1x128xf32>
    %43 = arith.mulf %41, %42 : vector<1x128xf32>
    %44 = vector.extract_strided_slice %1 {offsets = [1, 0], sizes = [1, 128], strides = [1, 1]} : vector<11x128xf32> to vector<1x128xf32>
    %45 = vector.extract_strided_slice %1 {offsets = [6, 0], sizes = [1, 128], strides = [1, 1]} : vector<11x128xf32> to vector<1x128xf32>
    %cst_19 = arith.constant 9.99999974E-6 : f32
    %46 = vector.broadcast %cst_19 : f32 to vector<1x128xf32>
    %47 = arith.addf %43, %46 : vector<1x128xf32>
    %48 = math.rsqrt %47 : vector<1x128xf32>
    %49 = arith.mulf %44, %48 : vector<1x128xf32>
    %50 = vector.broadcast %49 : vector<1x128xf32> to vector<8x128xf32>
    %51 = arith.mulf %38, %50 : vector<8x128xf32>
    %52 = vector.broadcast %45 : vector<1x128xf32> to vector<8x128xf32>
    %53 = arith.addf %51, %52 : vector<8x128xf32>
    %cst_20 = arith.constant 0.000000e+00 : f32
    %54 = vector.broadcast %cst_20 : f32 to vector<8x128xf32>
    %55 = arith.maximumf %53, %54 : vector<8x128xf32>
    %56 = arith.truncf %55 : vector<8x128xf32> to vector<8x128xbf16>
    %c2 = arith.constant 2 : index
    %c0_21 = arith.constant 0 : index
    %c0_22 = arith.constant 0 : index
    %57 = vector.load %arg1[%c2, %c0_21, %c0_22] : memref<6x128x128xbf16, #tpu.memory_space<vmem>>, vector<1x128x128xbf16>
    %58 = vector.shape_cast %57 : vector<1x128x128xbf16> to vector<128x128xbf16>
    %cst_23 = arith.constant dense<0.000000e+00> : vector<8x128xf32>
    %59 = tpu.matmul %56, %58, %cst_23 {dimension_numbers = #tpu.dot_dimension_numbers<[1], [0], [0], [1], [0, 0, 1, 1], [], []>} : vector<8x128xbf16>, vector<128x128xbf16>, vector<8x128xf32> -> vector<8x128xf32>
    %cst_24 = arith.constant dense<0.000000e+00> : vector<128xf32>
    %60 = vector.multi_reduction <add>, %59, %cst_24 [0] : vector<8x128xf32> to vector<128xf32>
    %61 = vector.shape_cast %60 : vector<128xf32> to vector<1x128xf32>
    %cst_25 = arith.constant 1.250000e-01 : f32
    %62 = vector.broadcast %cst_25 : f32 to vector<1x128xf32>
    %63 = arith.mulf %61, %62 : vector<1x128xf32>
    %64 = vector.broadcast %63 : vector<1x128xf32> to vector<8x128xf32>
    %65 = arith.subf %59, %64 : vector<8x128xf32>
    %66 = arith.mulf %65, %65 : vector<8x128xf32>
    %cst_26 = arith.constant dense<0.000000e+00> : vector<128xf32>
    %67 = vector.multi_reduction <add>, %66, %cst_26 [0] : vector<8x128xf32> to vector<128xf32>
    %68 = vector.shape_cast %67 : vector<128xf32> to vector<1x128xf32>
    %cst_27 = arith.constant 1.250000e-01 : f32
    %69 = vector.broadcast %cst_27 : f32 to vector<1x128xf32>
    %70 = arith.mulf %68, %69 : vector<1x128xf32>
    %71 = vector.extract_strided_slice %1 {offsets = [2, 0], sizes = [1, 128], strides = [1, 1]} : vector<11x128xf32> to vector<1x128xf32>
    %72 = vector.extract_strided_slice %1 {offsets = [7, 0], sizes = [1, 128], strides = [1, 1]} : vector<11x128xf32> to vector<1x128xf32>
    %cst_28 = arith.constant 9.99999974E-6 : f32
    %73 = vector.broadcast %cst_28 : f32 to vector<1x128xf32>
    %74 = arith.addf %70, %73 : vector<1x128xf32>
    %75 = math.rsqrt %74 : vector<1x128xf32>
    %76 = arith.mulf %71, %75 : vector<1x128xf32>
    %77 = vector.broadcast %76 : vector<1x128xf32> to vector<8x128xf32>
    %78 = arith.mulf %65, %77 : vector<8x128xf32>
    %79 = vector.broadcast %72 : vector<1x128xf32> to vector<8x128xf32>
    %80 = arith.addf %78, %79 : vector<8x128xf32>
    %cst_29 = arith.constant 0.000000e+00 : f32
    %81 = vector.broadcast %cst_29 : f32 to vector<8x128xf32>
    %82 = arith.maximumf %80, %81 : vector<8x128xf32>
    %83 = arith.truncf %82 : vector<8x128xf32> to vector<8x128xbf16>
    %c3 = arith.constant 3 : index
    %c0_30 = arith.constant 0 : index
    %c0_31 = arith.constant 0 : index
    %84 = vector.load %arg1[%c3, %c0_30, %c0_31] : memref<6x128x128xbf16, #tpu.memory_space<vmem>>, vector<1x128x128xbf16>
    %85 = vector.shape_cast %84 : vector<1x128x128xbf16> to vector<128x128xbf16>
    %cst_32 = arith.constant dense<0.000000e+00> : vector<8x128xf32>
    %86 = tpu.matmul %83, %85, %cst_32 {dimension_numbers = #tpu.dot_dimension_numbers<[1], [0], [0], [1], [0, 0, 1, 1], [], []>} : vector<8x128xbf16>, vector<128x128xbf16>, vector<8x128xf32> -> vector<8x128xf32>
    %cst_33 = arith.constant dense<0.000000e+00> : vector<128xf32>
    %87 = vector.multi_reduction <add>, %86, %cst_33 [0] : vector<8x128xf32> to vector<128xf32>
    %88 = vector.shape_cast %87 : vector<128xf32> to vector<1x128xf32>
    %cst_34 = arith.constant 1.250000e-01 : f32
    %89 = vector.broadcast %cst_34 : f32 to vector<1x128xf32>
    %90 = arith.mulf %88, %89 : vector<1x128xf32>
    %91 = vector.broadcast %90 : vector<1x128xf32> to vector<8x128xf32>
    %92 = arith.subf %86, %91 : vector<8x128xf32>
    %93 = arith.mulf %92, %92 : vector<8x128xf32>
    %cst_35 = arith.constant dense<0.000000e+00> : vector<128xf32>
    %94 = vector.multi_reduction <add>, %93, %cst_35 [0] : vector<8x128xf32> to vector<128xf32>
    %95 = vector.shape_cast %94 : vector<128xf32> to vector<1x128xf32>
    %cst_36 = arith.constant 1.250000e-01 : f32
    %96 = vector.broadcast %cst_36 : f32 to vector<1x128xf32>
    %97 = arith.mulf %95, %96 : vector<1x128xf32>
    %98 = vector.extract_strided_slice %1 {offsets = [3, 0], sizes = [1, 128], strides = [1, 1]} : vector<11x128xf32> to vector<1x128xf32>
    %99 = vector.extract_strided_slice %1 {offsets = [8, 0], sizes = [1, 128], strides = [1, 1]} : vector<11x128xf32> to vector<1x128xf32>
    %cst_37 = arith.constant 9.99999974E-6 : f32
    %100 = vector.broadcast %cst_37 : f32 to vector<1x128xf32>
    %101 = arith.addf %97, %100 : vector<1x128xf32>
    %102 = math.rsqrt %101 : vector<1x128xf32>
    %103 = arith.mulf %98, %102 : vector<1x128xf32>
    %104 = vector.broadcast %103 : vector<1x128xf32> to vector<8x128xf32>
    %105 = arith.mulf %92, %104 : vector<8x128xf32>
    %106 = vector.broadcast %99 : vector<1x128xf32> to vector<8x128xf32>
    %107 = arith.addf %105, %106 : vector<8x128xf32>
    %cst_38 = arith.constant 0.000000e+00 : f32
    %108 = vector.broadcast %cst_38 : f32 to vector<8x128xf32>
    %109 = arith.maximumf %107, %108 : vector<8x128xf32>
    %110 = arith.truncf %109 : vector<8x128xf32> to vector<8x128xbf16>
    %c4 = arith.constant 4 : index
    %c0_39 = arith.constant 0 : index
    %c0_40 = arith.constant 0 : index
    %111 = vector.load %arg1[%c4, %c0_39, %c0_40] : memref<6x128x128xbf16, #tpu.memory_space<vmem>>, vector<1x128x128xbf16>
    %112 = vector.shape_cast %111 : vector<1x128x128xbf16> to vector<128x128xbf16>
    %cst_41 = arith.constant dense<0.000000e+00> : vector<8x128xf32>
    %113 = tpu.matmul %110, %112, %cst_41 {dimension_numbers = #tpu.dot_dimension_numbers<[1], [0], [0], [1], [0, 0, 1, 1], [], []>} : vector<8x128xbf16>, vector<128x128xbf16>, vector<8x128xf32> -> vector<8x128xf32>
    %cst_42 = arith.constant dense<0.000000e+00> : vector<128xf32>
    %114 = vector.multi_reduction <add>, %113, %cst_42 [0] : vector<8x128xf32> to vector<128xf32>
    %115 = vector.shape_cast %114 : vector<128xf32> to vector<1x128xf32>
    %cst_43 = arith.constant 1.250000e-01 : f32
    %116 = vector.broadcast %cst_43 : f32 to vector<1x128xf32>
    %117 = arith.mulf %115, %116 : vector<1x128xf32>
    %118 = vector.broadcast %117 : vector<1x128xf32> to vector<8x128xf32>
    %119 = arith.subf %113, %118 : vector<8x128xf32>
    %120 = arith.mulf %119, %119 : vector<8x128xf32>
    %cst_44 = arith.constant dense<0.000000e+00> : vector<128xf32>
    %121 = vector.multi_reduction <add>, %120, %cst_44 [0] : vector<8x128xf32> to vector<128xf32>
    %122 = vector.shape_cast %121 : vector<128xf32> to vector<1x128xf32>
    %cst_45 = arith.constant 1.250000e-01 : f32
    %123 = vector.broadcast %cst_45 : f32 to vector<1x128xf32>
    %124 = arith.mulf %122, %123 : vector<1x128xf32>
    %125 = vector.extract_strided_slice %1 {offsets = [4, 0], sizes = [1, 128], strides = [1, 1]} : vector<11x128xf32> to vector<1x128xf32>
    %126 = vector.extract_strided_slice %1 {offsets = [9, 0], sizes = [1, 128], strides = [1, 1]} : vector<11x128xf32> to vector<1x128xf32>
    %cst_46 = arith.constant 9.99999974E-6 : f32
    %127 = vector.broadcast %cst_46 : f32 to vector<1x128xf32>
    %128 = arith.addf %124, %127 : vector<1x128xf32>
    %129 = math.rsqrt %128 : vector<1x128xf32>
    %130 = arith.mulf %125, %129 : vector<1x128xf32>
    %131 = vector.broadcast %130 : vector<1x128xf32> to vector<8x128xf32>
    %132 = arith.mulf %119, %131 : vector<8x128xf32>
    %133 = vector.broadcast %126 : vector<1x128xf32> to vector<8x128xf32>
    %134 = arith.addf %132, %133 : vector<8x128xf32>
    %cst_47 = arith.constant 0.000000e+00 : f32
    %135 = vector.broadcast %cst_47 : f32 to vector<8x128xf32>
    %136 = arith.maximumf %134, %135 : vector<8x128xf32>
    %137 = arith.truncf %136 : vector<8x128xf32> to vector<8x128xbf16>
    %c5 = arith.constant 5 : index
    %c0_48 = arith.constant 0 : index
    %c0_49 = arith.constant 0 : index
    %138 = vector.load %arg1[%c5, %c0_48, %c0_49] : memref<6x128x128xbf16, #tpu.memory_space<vmem>>, vector<1x128x128xbf16>
    %139 = vector.shape_cast %138 : vector<1x128x128xbf16> to vector<128x128xbf16>
    %cst_50 = arith.constant dense<0.000000e+00> : vector<8x128xf32>
    %140 = tpu.matmul %137, %139, %cst_50 {dimension_numbers = #tpu.dot_dimension_numbers<[1], [0], [0], [1], [0, 0, 1, 1], [], []>} : vector<8x128xbf16>, vector<128x128xbf16>, vector<8x128xf32> -> vector<8x128xf32>
    %141 = vector.extract_strided_slice %1 {offsets = [10, 0], sizes = [1, 128], strides = [1, 1]} : vector<11x128xf32> to vector<1x128xf32>
    %142 = vector.broadcast %141 : vector<1x128xf32> to vector<8x128xf32>
    %143 = arith.addf %140, %142 : vector<8x128xf32>
    %c0_51 = arith.constant 0 : index
    %c0_52 = arith.constant 0 : index
    %144 = vector.load %arg3[%c0_51, %c0_52] : memref<8x128xf32, #tpu.memory_space<vmem>>, vector<8x128xf32>
    tpu.vector_store %arg3[%c0_51, %c0_52], %143 {strides = array<i32>} : memref<8x128xf32, #tpu.memory_space<vmem>>, vector<8x128xf32>,
    return
  }
}

</mosaic_0001>

<llo_original>
// kernel: _forward.1
$region0: #{_forward.1}
  #allocation0 [shape = 'u32[]', space=smem, size = 0x4, offset = 0x4, fixed_abs, tag = 'smem constant byte address 0x4 - core index']
  #allocation1 [shape = 'u32[144,128]{1,0:T(1,128)}', space=vmem, size = 0x12000, scoped, tag = 'internal scratch']
  %s0 = inlined_call_operand.vmem [shape: f32[8,128], index: 0, kind: input, shape index: {}]
  %s1 = inlined_call_operand.hbm [shape: bf16[6,128,128], index: 1, kind: input, shape index: {}]
  %s2 = inlined_call_operand.vmem [shape: f32[11,128], index: 2, kind: input, shape index: {}]
  %s3 = inlined_call_operand.hbm [shape: f32[8,128], index: 3, kind: output, shape index: {}]
  %s4 = sld [smem:[#allocation0]]
  $region26: #{_forward.1} parent=0
    _
  %s6 = ssub.s32 1, %s4
  %s7 = scalar_select 0, %s6, %s4
  $region1: #{_forward.1} parent=0
    #allocation2 [shape = 'u8[196608]{0}', space=vmem, size = 0x30000, scoped, tag = 'input window, operand 1, single buffered']
    #allocation3 [shape = 's32[1]{0}', space=sflag, size = 0x4, scoped, tag = 'scoped memory for _forward.1']
    #allocation4 [shape = 's32[1]{0}', space=sflag, size = 0x4, scoped, tag = 'scoped memory for _forward.1']
    #allocation5 [shape = 'u8[4096]{0}', space=vmem, size = 0x1000, scoped, tag = 'output window, operand 0, single buffered']
    %8 = vsyncpa [#allocation3], 0
    %9 = vsyncpa [#allocation4], 0
    // Predicated region
    $region2: #{_forward.1} parent=1 // pred_check
      _
    $region3: #{_forward.1} parent=1 // pred_check_branch
      %11 = sbr.rel (0) target = $region5
    $region4: #{_forward.1} parent=1 // pred_region
      _
    $region5: #{_forward.1} parent=1 // pred_fallthru
      _
    // Predicated region
    $region6: #{_forward.1} parent=1 // pred_check
      _
    $region7: #{_forward.1} parent=1 // pred_check_branch
      %13 = sbr.rel (0) target = $region9
    $region8: #{_forward.1} parent=1 // pred_region
      %s15 = ssub.s32 6144, 6144
      %16 = vsyncadd [#allocation3], %s15
      %s17 = sshll.u32 [#allocation2], 4
      %s18 = int_to_ptr.vmem [resolvable:$true] %s17
      %23 = dma.hbm_to_vmem [thread:$0]  %s1, 6144, %s18, [#allocation3], 64, 64, 4
    $region9: #{_forward.1} parent=1 // pred_fallthru
      _
    // Predicated region
    $region10: #{_forward.1} parent=1 // pred_check
      _
    $region11: #{_forward.1} parent=1 // pred_check_branch
      %25 = sbr.rel (0) target = $region13
    $region12: #{_forward.1} parent=1 // pred_region
      _
    $region13: #{_forward.1} parent=1 // pred_fallthru
      _
    // Predicated region
    $region14: #{_forward.1} parent=1 // pred_check
      _
    $region15: #{_forward.1} parent=1 // pred_check_branch
      %27 = sbr.rel (0) target = $region17
    $region16: #{_forward.1} parent=1 // pred_region
      %28 = dma.done [#allocation3], 6144
    $region17: #{_forward.1} parent=1 // pred_fallthru
      _
    %v30 = vld [vmem:[%s0] sm:$0xff]
    %v31 = vld [vmem:[%s2] sm:$0xff]
    %v32 = vld [vmem:[%s2 + $0x8] sm:$0x7]
    %v33 = vpack.c.bf16 %v30, %v30
    %v34 = vld [vmem:[#allocation2] sm:$0xf]
    %v35 = vld [vmem:[#allocation2 + $0x4] sm:$0xf]
    %v36 = vld [vmem:[#allocation2 + $0x8] sm:$0xf]
    %v37 = vld [vmem:[#allocation2 + $0xc] sm:$0xf]
    %v38 = vld [vmem:[#allocation2 + $0x10] sm:$0xf]
    %v39 = vld [vmem:[#allocation2 + $0x14] sm:$0xf]
    %v40 = vld [vmem:[#allocation2 + $0x18] sm:$0xf]
    %v41 = vld [vmem:[#allocation2 + $0x1c] sm:$0xf]
    %v42 = vld [vmem:[#allocation2 + $0x20] sm:$0xf]
    %v43 = vld [vmem:[#allocation2 + $0x24] sm:$0xf]
    %v44 = vld [vmem:[#allocation2 + $0x28] sm:$0xf]
    %v45 = vld [vmem:[#allocation2 + $0x2c] sm:$0xf]
    %v46 = vld [vmem:[#allocation2 + $0x30] sm:$0xf]
    %v47 = vld [vmem:[#allocation2 + $0x34] sm:$0xf]
    %v48 = vld [vmem:[#allocation2 + $0x38] sm:$0xf]
    %v49 = vld [vmem:[#allocation2 + $0x3c] sm:$0xf]
    %v66 = vunpack.c.l.b16 %v34
    %v67 = vunpack.c.l.b16 %v35
    %v68 = vunpack.c.l.b16 %v36
    %v69 = vunpack.c.l.b16 %v37
    %v70 = vunpack.c.l.b16 %v38
    %v71 = vunpack.c.l.b16 %v39
    %v72 = vunpack.c.l.b16 %v40
    %v73 = vunpack.c.l.b16 %v41
    %v74 = vunpack.c.l.b16 %v42
    %v75 = vunpack.c.l.b16 %v43
    %v76 = vunpack.c.l.b16 %v44
    %v77 = vunpack.c.l.b16 %v45
    %v78 = vunpack.c.l.b16 %v46
    %v79 = vunpack.c.l.b16 %v47
    %v80 = vunpack.c.l.b16 %v48
    %v81 = vunpack.c.l.b16 %v49
    %v82 = vpack.c.b16 %v67, %v66
    %v83 = vpack.c.b16 %v69, %v68
    %v84 = vpack.c.b16 %v71, %v70
    %v85 = vpack.c.b16 %v73, %v72
    %v86 = vpack.c.b16 %v75, %v74
    %v87 = vpack.c.b16 %v77, %v76
    %v88 = vpack.c.b16 %v79, %v78
    %v89 = vpack.c.b16 %v81, %v80
    %98 = vmatprep.subr.bf16.mxu0 0
    %99 = vmatpush1.bf16.msra.mxu0 %v89
    %100 = vmatprep.subr.bf16.mxu0 0
    %101 = vmatpush1.bf16.msra.mxu0 %v88
    %102 = vmatprep.subr.bf16.mxu0 0
    %103 = vmatpush1.bf16.msra.mxu0 %v87
    %104 = vmatprep.subr.bf16.mxu0 0
    %105 = vmatpush1.bf16.msra.mxu0 %v86
    %106 = vmatprep.subr.bf16.mxu0 0
    %107 = vmatpush1.bf16.msra.mxu0 %v85
    %108 = vmatprep.subr.bf16.mxu0 0
    %109 = vmatpush1.bf16.msra.mxu0 %v84
    %110 = vmatprep.subr.bf16.mxu0 0
    %111 = vmatpush1.bf16.msra.mxu0 %v83
    %112 = vmatprep.subr.bf16.mxu0 0
    %113 = vmatpush1.bf16.msra.mxu0 %v82
    %114 = vmatprep.subr.bf16.mxu0 0
    %115 = vmatpush2.bf16.msra.mxu0 0
    %116 = vmatprep.subr.bf16.mxu0 0
    %117 = vmatpush2.bf16.msra.mxu0 0
    %118 = vmatprep.subr.bf16.mxu0 0
    %119 = vmatpush2.bf16.msra.mxu0 0
    %120 = vmatprep.subr.bf16.mxu0 0
    %121 = vmatpush2.bf16.msra.mxu0 0
    %122 = vmatprep.subr.bf16.mxu0 0
    %123 = vmatpush2.bf16.msra.mxu0 0
    %124 = vmatprep.subr.bf16.mxu0 0
    %125 = vmatpush2.bf16.msra.mxu0 0
    %126 = vmatprep.subr.bf16.mxu0 0
    %127 = vmatpush2.bf16.msra.mxu0 0
    %128 = vmatprep.subr.bf16.mxu0 0
    %129 = vmatpush2.bf16.msra.mxu0 0
    %130 = vmatprep.mubr.bf16.mxu0 0
    %131 = vmatmul.mubr.bf16.gmra.mxu0 %v33
    %v132 = vpop.f32.mrf.mxu0
    %v133 = vadd.f32 0.0, %v132
    %v134 = vpop.f32.mrf.mxu0
    %v135 = vpop.f32.mrf.mxu0
    %v136 = vpop.f32.mrf.mxu0
    %137 = vdwg.mxu0
    %v138 = vrot.slane %v133, 4
    %v139 = vadd.f32 %v133, %v138
    %v140 = vrot.slane %v139, 2
    %v141 = vadd.f32 %v139, %v140
    %v142 = vrot.slane %v141, 1
    %v143 = vadd.f32 %v141, %v142
    %v144 = vmul.f32 %v143, 0.125
    %v145 = vsub.f32 %v133, %v144
    %v146 = vmul.f32 %v145, %v145
    %v147 = vrot.slane %v146, 4
    %v148 = vadd.f32 %v146, %v147
    %v149 = vrot.slane %v148, 2
    %v150 = vadd.f32 %v148, %v149
    %v151 = vrot.slane %v150, 1
    %v152 = vadd.f32 %v150, %v151
    %v153 = vmul.f32 %v152, 0.125
    %v154 = vadd.f32 %v153, 1e-05
    %v155 = vrsqrt.pop %v154
    %v156 = vmul.f32 %v31, %v155
    %v157 = vlaneseq
    %v158 = vshrl.u32 %v157, 7
    %v159 = vsub.s32 0, %v158
    %v160 = vrot.slane %v156, %v159
    %v161 = vmul.f32 %v145, %v160
    %v162 = vlaneseq
    %v163 = vshrl.u32 %v162, 7
    %v164 = vsub.s32 5, %v163
    %v165 = vrot.slane %v31, %v164
    %v166 = vadd.f32 %v161, %v165
    %v167 = vmax.f32 %v166, 0.0
    %v168 = vpack.c.bf16 %v167, %v167
    %s169 = scalar_lea.vmem [#allocation2], 64
    %v170 = vld [vmem:[%s169] sm:$0xf]
    %v171 = vld [vmem:[%s169 + $0x4] sm:$0xf]
    %v172 = vld [vmem:[%s169 + $0x8] sm:$0xf]
    %v173 = vld [vmem:[%s169 + $0xc] sm:$0xf]
    %v174 = vld [vmem:[%s169 + $0x10] sm:$0xf]
    %v175 = vld [vmem:[%s169 + $0x14] sm:$0xf]
    %v176 = vld [vmem:[%s169 + $0x18] sm:$0xf]
    %v177 = vld [vmem:[%s169 + $0x1c] sm:$0xf]
    %v178 = vld [vmem:[%s169 + $0x20] sm:$0xf]
    %v179 = vld [vmem:[%s169 + $0x24] sm:$0xf]
    %v180 = vld [vmem:[%s169 + $0x28] sm:$0xf]
    %v181 = vld [vmem:[%s169 + $0x2c] sm:$0xf]
    %v182 = vld [vmem:[%s169 + $0x30] sm:$0xf]
    %v183 = vld [vmem:[%s169 + $0x34] sm:$0xf]
    %v184 = vld [vmem:[%s169 + $0x38] sm:$0xf]
    %v185 = vld [vmem:[%s169 + $0x3c] sm:$0xf]
    %v202 = vunpack.c.l.b16 %v170
    %v203 = vunpack.c.l.b16 %v171
    %v204 = vunpack.c.l.b16 %v172
    %v205 = vunpack.c.l.b16 %v173
    %v206 = vunpack.c.l.b16 %v174
    %v207 = vunpack.c.l.b16 %v175
    %v208 = vunpack.c.l.b16 %v176
    %v209 = vunpack.c.l.b16 %v177
    %v210 = vunpack.c.l.b16 %v178
    %v211 = vunpack.c.l.b16 %v179
    %v212 = vunpack.c.l.b16 %v180
    %v213 = vunpack.c.l.b16 %v181
    %v214 = vunpack.c.l.b16 %v182
    %v215 = vunpack.c.l.b16 %v183
    %v216 = vunpack.c.l.b16 %v184
    %v217 = vunpack.c.l.b16 %v185
    %v218 = vpack.c.b16 %v203, %v202
    %v219 = vpack.c.b16 %v205, %v204
    %v220 = vpack.c.b16 %v207, %v206
    %v221 = vpack.c.b16 %v209, %v208
    %v222 = vpack.c.b16 %v211, %v210
    %v223 = vpack.c.b16 %v213, %v212
    %v224 = vpack.c.b16 %v215, %v214
    %v225 = vpack.c.b16 %v217, %v216
    %234 = vmatprep.subr.bf16.mxu0 0
    %235 = vmatpush1.bf16.msra.mxu0 %v225
    %236 = vmatprep.subr.bf16.mxu0 0
    %237 = vmatpush1.bf16.msra.mxu0 %v224
    %238 = vmatprep.subr.bf16.mxu0 0
    %239 = vmatpush1.bf16.msra.mxu0 %v223
    %240 = vmatprep.subr.bf16.mxu0 0
    %241 = vmatpush1.bf16.msra.mxu0 %v222
    %242 = vmatprep.subr.bf16.mxu0 0
    %243 = vmatpush1.bf16.msra.mxu0 %v221
    %244 = vmatprep.subr.bf16.mxu0 0
    %245 = vmatpush1.bf16.msra.mxu0 %v220
    %246 = vmatprep.subr.bf16.mxu0 0
    %247 = vmatpush1.bf16.msra.mxu0 %v219
    %248 = vmatprep.subr.bf16.mxu0 0
    %249 = vmatpush1.bf16.msra.mxu0 %v218
    %250 = vmatprep.subr.bf16.mxu0 0
    %251 = vmatpush2.bf16.msra.mxu0 0
    %252 = vmatprep.subr.bf16.mxu0 0
    %253 = vmatpush2.bf16.msra.mxu0 0
    %254 = vmatprep.subr.bf16.mxu0 0
    %255 = vmatpush2.bf16.msra.mxu0 0
    %256 = vmatprep.subr.bf16.mxu0 0
    %257 = vmatpush2.bf16.msra.mxu0 0
    %258 = vmatprep.subr.bf16.mxu0 0
    %259 = vmatpush2.bf16.msra.mxu0 0
    %260 = vmatprep.subr.bf16.mxu0 0
    %261 = vmatpush2.bf16.msra.mxu0 0
    %262 = vmatprep.subr.bf16.mxu0 0
    %263 = vmatpush2.bf16.msra.mxu0 0
    %264 = vmatprep.subr.bf16.mxu0 0
    %265 = vmatpush2.bf16.msra.mxu0 0
    %266 = vmatprep.mubr.bf16.mxu0 0
    %267 = vmatmul.mubr.bf16.gmra.mxu0 %v168
    %v268 = vpop.f32.mrf.mxu0
    %v269 = vadd.f32 0.0, %v268
    %v270 = vpop.f32.mrf.mxu0
    %v271 = vpop.f32.mrf.mxu0
    %v272 = vpop.f32.mrf.mxu0
    %273 = vdwg.mxu0
    %v274 = vrot.slane %v269, 4
    %v275 = vadd.f32 %v269, %v274
    %v276 = vrot.slane %v275, 2
    %v277 = vadd.f32 %v275, %v276
    %v278 = vrot.slane %v277, 1
    %v279 = vadd.f32 %v277, %v278
    %v280 = vmul.f32 %v279, 0.125
    %v281 = vsub.f32 %v269, %v280
    %v282 = vmul.f32 %v281, %v281
    %v283 = vrot.slane %v282, 4
    %v284 = vadd.f32 %v282, %v283
    %v285 = vrot.slane %v284, 2
    %v286 = vadd.f32 %v284, %v285
    %v287 = vrot.slane %v286, 1
    %v288 = vadd.f32 %v286, %v287
    %v289 = vmul.f32 %v288, 0.125
    %v290 = vadd.f32 %v289, 1e-05
    %v291 = vrsqrt.pop %v290
    %v292 = vmul.f32 %v31, %v291
    %v293 = vlaneseq
    %v294 = vshrl.u32 %v293, 7
    %v295 = vsub.s32 1, %v294
    %v296 = vrot.slane %v292, %v295
    %v297 = vmul.f32 %v281, %v296
    %v298 = vlaneseq
    %v299 = vshrl.u32 %v298, 7
    %v300 = vsub.s32 6, %v299
    %v301 = vrot.slane %v31, %v300
    %v302 = vadd.f32 %v297, %v301
    %v303 = vmax.f32 %v302, 0.0
    %v304 = vpack.c.bf16 %v303, %v303
    %s305 = scalar_lea.vmem [#allocation2], 128
    %v306 = vld [vmem:[%s305] sm:$0xf]
    %v307 = vld [vmem:[%s305 + $0x4] sm:$0xf]
    %v308 = vld [vmem:[%s305 + $0x8] sm:$0xf]
    %v309 = vld [vmem:[%s305 + $0xc] sm:$0xf]
    %v310 = vld [vmem:[%s305 + $0x10] sm:$0xf]
    %v311 = vld [vmem:[%s305 + $0x14] sm:$0xf]
    %v312 = vld [vmem:[%s305 + $0x18] sm:$0xf]
    %v313 = vld [vmem:[%s305 + $0x1c] sm:$0xf]
    %v314 = vld [vmem:[%s305 + $0x20] sm:$0xf]
    %v315 = vld [vmem:[%s305 + $0x24] sm:$0xf]
    %v316 = vld [vmem:[%s305 + $0x28] sm:$0xf]
    %v317 = vld [vmem:[%s305 + $0x2c] sm:$0xf]
    %v318 = vld [vmem:[%s305 + $0x30] sm:$0xf]
    %v319 = vld [vmem:[%s305 + $0x34] sm:$0xf]
    %v320 = vld [vmem:[%s305 + $0x38] sm:$0xf]
    %v321 = vld [vmem:[%s305 + $0x3c] sm:$0xf]
    %v338 = vunpack.c.l.b16 %v306
    %v339 = vunpack.c.l.b16 %v307
    %v340 = vunpack.c.l.b16 %v308
    %v341 = vunpack.c.l.b16 %v309
    %v342 = vunpack.c.l.b16 %v310
    %v343 = vunpack.c.l.b16 %v311
    %v344 = vunpack.c.l.b16 %v312
    %v345 = vunpack.c.l.b16 %v313
    %v346 = vunpack.c.l.b16 %v314
    %v347 = vunpack.c.l.b16 %v315
    %v348 = vunpack.c.l.b16 %v316
    %v349 = vunpack.c.l.b16 %v317
    %v350 = vunpack.c.l.b16 %v318
    %v351 = vunpack.c.l.b16 %v319
    %v352 = vunpack.c.l.b16 %v320
    %v353 = vunpack.c.l.b16 %v321
    %v354 = vpack.c.b16 %v339, %v338
    %v355 = vpack.c.b16 %v341, %v340
    %v356 = vpack.c.b16 %v343, %v342
    %v357 = vpack.c.b16 %v345, %v344
    %v358 = vpack.c.b16 %v347, %v346
    %v359 = vpack.c.b16 %v349, %v348
    %v360 = vpack.c.b16 %v351, %v350
    %v361 = vpack.c.b16 %v353, %v352
    %370 = vmatprep.subr.bf16.mxu0 0
    %371 = vmatpush1.bf16.msra.mxu0 %v361
    %372 = vmatprep.subr.bf16.mxu0 0
    %373 = vmatpush1.bf16.msra.mxu0 %v360
    %374 = vmatprep.subr.bf16.mxu0 0
    %375 = vmatpush1.bf16.msra.mxu0 %v359
    %376 = vmatprep.subr.bf16.mxu0 0
    %377 = vmatpush1.bf16.msra.mxu0 %v358
    %378 = vmatprep.subr.bf16.mxu0 0
    %379 = vmatpush1.bf16.msra.mxu0 %v357
    %380 = vmatprep.subr.bf16.mxu0 0
    %381 = vmatpush1.bf16.msra.mxu0 %v356
    %382 = vmatprep.subr.bf16.mxu0 0
    %383 = vmatpush1.bf16.msra.mxu0 %v355
    %384 = vmatprep.subr.bf16.mxu0 0
    %385 = vmatpush1.bf16.msra.mxu0 %v354
    %386 = vmatprep.subr.bf16.mxu0 0
    %387 = vmatpush2.bf16.msra.mxu0 0
    %388 = vmatprep.subr.bf16.mxu0 0
    %389 = vmatpush2.bf16.msra.mxu0 0
    %390 = vmatprep.subr.bf16.mxu0 0
    %391 = vmatpush2.bf16.msra.mxu0 0
    %392 = vmatprep.subr.bf16.mxu0 0
    %393 = vmatpush2.bf16.msra.mxu0 0
    %394 = vmatprep.subr.bf16.mxu0 0
    %395 = vmatpush2.bf16.msra.mxu0 0
    %396 = vmatprep.subr.bf16.mxu0 0
    %397 = vmatpush2.bf16.msra.mxu0 0
    %398 = vmatprep.subr.bf16.mxu0 0
    %399 = vmatpush2.bf16.msra.mxu0 0
    %400 = vmatprep.subr.bf16.mxu0 0
    %401 = vmatpush2.bf16.msra.mxu0 0
    %402 = vmatprep.mubr.bf16.mxu0 0
    %403 = vmatmul.mubr.bf16.gmra.mxu0 %v304
    %v404 = vpop.f32.mrf.mxu0
    %v405 = vadd.f32 0.0, %v404
    %v406 = vpop.f32.mrf.mxu0
    %v407 = vpop.f32.mrf.mxu0
    %v408 = vpop.f32.mrf.mxu0
    %409 = vdwg.mxu0
    %v410 = vrot.slane %v405, 4
    %v411 = vadd.f32 %v405, %v410
    %v412 = vrot.slane %v411, 2
    %v413 = vadd.f32 %v411, %v412
    %v414 = vrot.slane %v413, 1
    %v415 = vadd.f32 %v413, %v414
    %v416 = vmul.f32 %v415, 0.125
    %v417 = vsub.f32 %v405, %v416
    %v418 = vmul.f32 %v417, %v417
    %v419 = vrot.slane %v418, 4
    %v420 = vadd.f32 %v418, %v419
    %v421 = vrot.slane %v420, 2
    %v422 = vadd.f32 %v420, %v421
    %v423 = vrot.slane %v422, 1
    %v424 = vadd.f32 %v422, %v423
    %v425 = vmul.f32 %v424, 0.125
    %v426 = vadd.f32 %v425, 1e-05
    %v427 = vrsqrt.pop %v426
    %v428 = vmul.f32 %v31, %v427
    %v429 = vlaneseq
    %v430 = vshrl.u32 %v429, 7
    %v431 = vsub.s32 2, %v430
    %v432 = vrot.slane %v428, %v431
    %v433 = vmul.f32 %v417, %v432
    %v434 = vlaneseq
    %v435 = vshrl.u32 %v434, 7
    %v436 = vsub.s32 7, %v435
    %v437 = vrot.slane %v31, %v436
    %v438 = vadd.f32 %v433, %v437
    %v439 = vmax.f32 %v438, 0.0
    %v440 = vpack.c.bf16 %v439, %v439
    %s441 = scalar_lea.vmem [#allocation2], 192
    %v442 = vld [vmem:[%s441] sm:$0xf]
    %v443 = vld [vmem:[%s441 + $0x4] sm:$0xf]
    %v444 = vld [vmem:[%s441 + $0x8] sm:$0xf]
    %v445 = vld [vmem:[%s441 + $0xc] sm:$0xf]
    %v446 = vld [vmem:[%s441 + $0x10] sm:$0xf]
    %v447 = vld [vmem:[%s441 + $0x14] sm:$0xf]
    %v448 = vld [vmem:[%s441 + $0x18] sm:$0xf]
    %v449 = vld [vmem:[%s441 + $0x1c] sm:$0xf]
    %v450 = vld [vmem:[%s441 + $0x20] sm:$0xf]
    %v451 = vld [vmem:[%s441 + $0x24] sm:$0xf]
    %v452 = vld [vmem:[%s441 + $0x28] sm:$0xf]
    %v453 = vld [vmem:[%s441 + $0x2c] sm:$0xf]
    %v454 = vld [vmem:[%s441 + $0x30] sm:$0xf]
    %v455 = vld [vmem:[%s441 + $0x34] sm:$0xf]
    %v456 = vld [vmem:[%s441 + $0x38] sm:$0xf]
    %v457 = vld [vmem:[%s441 + $0x3c] sm:$0xf]
    %v474 = vunpack.c.l.b16 %v442
    %v475 = vunpack.c.l.b16 %v443
    %v476 = vunpack.c.l.b16 %v444
    %v477 = vunpack.c.l.b16 %v445
    %v478 = vunpack.c.l.b16 %v446
    %v479 = vunpack.c.l.b16 %v447
    %v480 = vunpack.c.l.b16 %v448
    %v481 = vunpack.c.l.b16 %v449
    %v482 = vunpack.c.l.b16 %v450
    %v483 = vunpack.c.l.b16 %v451
    %v484 = vunpack.c.l.b16 %v452
    %v485 = vunpack.c.l.b16 %v453
    %v486 = vunpack.c.l.b16 %v454
    %v487 = vunpack.c.l.b16 %v455
    %v488 = vunpack.c.l.b16 %v456
    %v489 = vunpack.c.l.b16 %v457
    %v490 = vpack.c.b16 %v475, %v474
    %v491 = vpack.c.b16 %v477, %v476
    %v492 = vpack.c.b16 %v479, %v478
    %v493 = vpack.c.b16 %v481, %v480
    %v494 = vpack.c.b16 %v483, %v482
    %v495 = vpack.c.b16 %v485, %v484
    %v496 = vpack.c.b16 %v487, %v486
    %v497 = vpack.c.b16 %v489, %v488
    %506 = vmatprep.subr.bf16.mxu0 0
    %507 = vmatpush1.bf16.msra.mxu0 %v497
    %508 = vmatprep.subr.bf16.mxu0 0
    %509 = vmatpush1.bf16.msra.mxu0 %v496
    %510 = vmatprep.subr.bf16.mxu0 0
    %511 = vmatpush1.bf16.msra.mxu0 %v495
    %512 = vmatprep.subr.bf16.mxu0 0
    %513 = vmatpush1.bf16.msra.mxu0 %v494
    %514 = vmatprep.subr.bf16.mxu0 0
    %515 = vmatpush1.bf16.msra.mxu0 %v493
    %516 = vmatprep.subr.bf16.mxu0 0
    %517 = vmatpush1.bf16.msra.mxu0 %v492
    %518 = vmatprep.subr.bf16.mxu0 0
    %519 = vmatpush1.bf16.msra.mxu0 %v491
    %520 = vmatprep.subr.bf16.mxu0 0
    %521 = vmatpush1.bf16.msra.mxu0 %v490
    %522 = vmatprep.subr.bf16.mxu0 0
    %523 = vmatpush2.bf16.msra.mxu0 0
    %524 = vmatprep.subr.bf16.mxu0 0
    %525 = vmatpush2.bf16.msra.mxu0 0
    %526 = vmatprep.subr.bf16.mxu0 0
    %527 = vmatpush2.bf16.msra.mxu0 0
    %528 = vmatprep.subr.bf16.mxu0 0
    %529 = vmatpush2.bf16.msra.mxu0 0
    %530 = vmatprep.subr.bf16.mxu0 0
    %531 = vmatpush2.bf16.msra.mxu0 0
    %532 = vmatprep.subr.bf16.mxu0 0
    %533 = vmatpush2.bf16.msra.mxu0 0
    %534 = vmatprep.subr.bf16.mxu0 0
    %535 = vmatpush2.bf16.msra.mxu0 0
    %536 = vmatprep.subr.bf16.mxu0 0
    %537 = vmatpush2.bf16.msra.mxu0 0
    %538 = vmatprep.mubr.bf16.mxu0 0
    %539 = vmatmul.mubr.bf16.gmra.mxu0 %v440
    %v540 = vpop.f32.mrf.mxu0
    %v541 = vadd.f32 0.0, %v540
    %v542 = vpop.f32.mrf.mxu0
    %v543 = vpop.f32.mrf.mxu0
    %v544 = vpop.f32.mrf.mxu0
    %545 = vdwg.mxu0
    %v546 = vrot.slane %v541, 4
    %v547 = vadd.f32 %v541, %v546
    %v548 = vrot.slane %v547, 2
    %v549 = vadd.f32 %v547, %v548
    %v550 = vrot.slane %v549, 1
    %v551 = vadd.f32 %v549, %v550
    %v552 = vmul.f32 %v551, 0.125
    %v553 = vsub.f32 %v541, %v552
    %v554 = vmul.f32 %v553, %v553
    %v555 = vrot.slane %v554, 4
    %v556 = vadd.f32 %v554, %v555
    %v557 = vrot.slane %v556, 2
    %v558 = vadd.f32 %v556, %v557
    %v559 = vrot.slane %v558, 1
    %v560 = vadd.f32 %v558, %v559
    %v561 = vmul.f32 %v560, 0.125
    %v562 = vadd.f32 %v561, 1e-05
    %v563 = vrsqrt.pop %v562
    %v564 = vmul.f32 %v31, %v563
    %v565 = vlaneseq
    %v566 = vshrl.u32 %v565, 7
    %v567 = vsub.s32 3, %v566
    %v568 = vrot.slane %v564, %v567
    %v569 = vmul.f32 %v553, %v568
    %v570 = vlaneseq
    %v571 = vshrl.u32 %v570, 7
    %v572 = vsub.s32 0, %v571
    %v573 = vrot.slane %v32, %v572
    %v574 = vadd.f32 %v569, %v573
    %v575 = vmax.f32 %v574, 0.0
    %v576 = vpack.c.bf16 %v575, %v575
    %s577 = scalar_lea.vmem [#allocation2], 256
    %v578 = vld [vmem:[%s577] sm:$0xf]
    %v579 = vld [vmem:[%s577 + $0x4] sm:$0xf]
    %v580 = vld [vmem:[%s577 + $0x8] sm:$0xf]
    %v581 = vld [vmem:[%s577 + $0xc] sm:$0xf]
    %v582 = vld [vmem:[%s577 + $0x10] sm:$0xf]
    %v583 = vld [vmem:[%s577 + $0x14] sm:$0xf]
    %v584 = vld [vmem:[%s577 + $0x18] sm:$0xf]
    %v585 = vld [vmem:[%s577 + $0x1c] sm:$0xf]
    %v586 = vld [vmem:[%s577 + $0x20] sm:$0xf]
    %v587 = vld [vmem:[%s577 + $0x24] sm:$0xf]
    %v588 = vld [vmem:[%s577 + $0x28] sm:$0xf]
    %v589 = vld [vmem:[%s577 + $0x2c] sm:$0xf]
    %v590 = vld [vmem:[%s577 + $0x30] sm:$0xf]
    %v591 = vld [vmem:[%s577 + $0x34] sm:$0xf]
    %v592 = vld [vmem:[%s577 + $0x38] sm:$0xf]
    %v593 = vld [vmem:[%s577 + $0x3c] sm:$0xf]
    %v610 = vunpack.c.l.b16 %v578
    %v611 = vunpack.c.l.b16 %v579
    %v612 = vunpack.c.l.b16 %v580
    %v613 = vunpack.c.l.b16 %v581
    %v614 = vunpack.c.l.b16 %v582
    %v615 = vunpack.c.l.b16 %v583
    %v616 = vunpack.c.l.b16 %v584
    %v617 = vunpack.c.l.b16 %v585
    %v618 = vunpack.c.l.b16 %v586
    %v619 = vunpack.c.l.b16 %v587
    %v620 = vunpack.c.l.b16 %v588
    %v621 = vunpack.c.l.b16 %v589
    %v622 = vunpack.c.l.b16 %v590
    %v623 = vunpack.c.l.b16 %v591
    %v624 = vunpack.c.l.b16 %v592
    %v625 = vunpack.c.l.b16 %v593
    %v626 = vpack.c.b16 %v611, %v610
    %v627 = vpack.c.b16 %v613, %v612
    %v628 = vpack.c.b16 %v615, %v614
    %v629 = vpack.c.b16 %v617, %v616
    %v630 = vpack.c.b16 %v619, %v618
    %v631 = vpack.c.b16 %v621, %v620
    %v632 = vpack.c.b16 %v623, %v622
    %v633 = vpack.c.b16 %v625, %v624
    %642 = vmatprep.subr.bf16.mxu0 0
    %643 = vmatpush1.bf16.msra.mxu0 %v633
    %644 = vmatprep.subr.bf16.mxu0 0
    %645 = vmatpush1.bf16.msra.mxu0 %v632
    %646 = vmatprep.subr.bf16.mxu0 0
    %647 = vmatpush1.bf16.msra.mxu0 %v631
    %648 = vmatprep.subr.bf16.mxu0 0
    %649 = vmatpush1.bf16.msra.mxu0 %v630
    %650 = vmatprep.subr.bf16.mxu0 0
    %651 = vmatpush1.bf16.msra.mxu0 %v629
    %652 = vmatprep.subr.bf16.mxu0 0
    %653 = vmatpush1.bf16.msra.mxu0 %v628
    %654 = vmatprep.subr.bf16.mxu0 0
    %655 = vmatpush1.bf16.msra.mxu0 %v627
    %656 = vmatprep.subr.bf16.mxu0 0
    %657 = vmatpush1.bf16.msra.mxu0 %v626
    %658 = vmatprep.subr.bf16.mxu0 0
    %659 = vmatpush2.bf16.msra.mxu0 0
    %660 = vmatprep.subr.bf16.mxu0 0
    %661 = vmatpush2.bf16.msra.mxu0 0
    %662 = vmatprep.subr.bf16.mxu0 0
    %663 = vmatpush2.bf16.msra.mxu0 0
    %664 = vmatprep.subr.bf16.mxu0 0
    %665 = vmatpush2.bf16.msra.mxu0 0
    %666 = vmatprep.subr.bf16.mxu0 0
    %667 = vmatpush2.bf16.msra.mxu0 0
    %668 = vmatprep.subr.bf16.mxu0 0
    %669 = vmatpush2.bf16.msra.mxu0 0
    %670 = vmatprep.subr.bf16.mxu0 0
    %671 = vmatpush2.bf16.msra.mxu0 0
    %672 = vmatprep.subr.bf16.mxu0 0
    %673 = vmatpush2.bf16.msra.mxu0 0
    %674 = vmatprep.mubr.bf16.mxu0 0
    %675 = vmatmul.mubr.bf16.gmra.mxu0 %v576
    %v676 = vpop.f32.mrf.mxu0
    %v677 = vadd.f32 0.0, %v676
    %v678 = vpop.f32.mrf.mxu0
    %v679 = vpop.f32.mrf.mxu0
    %v680 = vpop.f32.mrf.mxu0
    %681 = vdwg.mxu0
    %v682 = vrot.slane %v677, 4
    %v683 = vadd.f32 %v677, %v682
    %v684 = vrot.slane %v683, 2
    %v685 = vadd.f32 %v683, %v684
    %v686 = vrot.slane %v685, 1
    %v687 = vadd.f32 %v685, %v686
    %v688 = vmul.f32 %v687, 0.125
    %v689 = vsub.f32 %v677, %v688
    %v690 = vmul.f32 %v689, %v689
    %v691 = vrot.slane %v690, 4
    %v692 = vadd.f32 %v690, %v691
    %v693 = vrot.slane %v692, 2
    %v694 = vadd.f32 %v692, %v693
    %v695 = vrot.slane %v694, 1
    %v696 = vadd.f32 %v694, %v695
    %v697 = vmul.f32 %v696, 0.125
    %v698 = vadd.f32 %v697, 1e-05
    %v699 = vrsqrt.pop %v698
    %v700 = vmul.f32 %v31, %v699
    %v701 = vlaneseq
    %v702 = vshrl.u32 %v701, 7
    %v703 = vsub.s32 4, %v702
    %v704 = vrot.slane %v700, %v703
    %v705 = vmul.f32 %v689, %v704
    %v706 = vlaneseq
    %v707 = vshrl.u32 %v706, 7
    %v708 = vsub.s32 1, %v707
    %v709 = vrot.slane %v32, %v708
    %v710 = vadd.f32 %v705, %v709
    %v711 = vmax.f32 %v710, 0.0
    %v712 = vpack.c.bf16 %v711, %v711
    %s713 = scalar_lea.vmem [#allocation2], 320
    %v714 = vld [vmem:[%s713] sm:$0xf]
    %v715 = vld [vmem:[%s713 + $0x4] sm:$0xf]
    %v716 = vld [vmem:[%s713 + $0x8] sm:$0xf]
    %v717 = vld [vmem:[%s713 + $0xc] sm:$0xf]
    %v718 = vld [vmem:[%s713 + $0x10] sm:$0xf]
    %v719 = vld [vmem:[%s713 + $0x14] sm:$0xf]
    %v720 = vld [vmem:[%s713 + $0x18] sm:$0xf]
    %v721 = vld [vmem:[%s713 + $0x1c] sm:$0xf]
    %v722 = vld [vmem:[%s713 + $0x20] sm:$0xf]
    %v723 = vld [vmem:[%s713 + $0x24] sm:$0xf]
    %v724 = vld [vmem:[%s713 + $0x28] sm:$0xf]
    %v725 = vld [vmem:[%s713 + $0x2c] sm:$0xf]
    %v726 = vld [vmem:[%s713 + $0x30] sm:$0xf]
    %v727 = vld [vmem:[%s713 + $0x34] sm:$0xf]
    %v728 = vld [vmem:[%s713 + $0x38] sm:$0xf]
    %v729 = vld [vmem:[%s713 + $0x3c] sm:$0xf]
    %v730 = vlaneseq
    %v731 = vshrl.u32 %v730, 7
    %v732 = vsub.s32 2, %v731
    %v733 = vrot.slane %v32, %v732
    %v750 = vunpack.c.l.b16 %v714
    %v751 = vunpack.c.l.b16 %v715
    %v752 = vunpack.c.l.b16 %v716
    %v753 = vunpack.c.l.b16 %v717
    %v754 = vunpack.c.l.b16 %v718
    %v755 = vunpack.c.l.b16 %v719
    %v756 = vunpack.c.l.b16 %v720
    %v757 = vunpack.c.l.b16 %v721
    %v758 = vunpack.c.l.b16 %v722
    %v759 = vunpack.c.l.b16 %v723
    %v760 = vunpack.c.l.b16 %v724
    %v761 = vunpack.c.l.b16 %v725
    %v762 = vunpack.c.l.b16 %v726
    %v763 = vunpack.c.l.b16 %v727
    %v764 = vunpack.c.l.b16 %v728
    %v765 = vunpack.c.l.b16 %v729
    %v766 = vpack.c.b16 %v751, %v750
    %v767 = vpack.c.b16 %v753, %v752
    %v768 = vpack.c.b16 %v755, %v754
    %v769 = vpack.c.b16 %v757, %v756
    %v770 = vpack.c.b16 %v759, %v758
    %v771 = vpack.c.b16 %v761, %v760
    %v772 = vpack.c.b16 %v763, %v762
    %v773 = vpack.c.b16 %v765, %v764
    %782 = vmatprep.subr.bf16.mxu0 0
    %783 = vmatpush1.bf16.msra.mxu0 %v773
    %784 = vmatprep.subr.bf16.mxu0 0
    %785 = vmatpush1.bf16.msra.mxu0 %v772
    %786 = vmatprep.subr.bf16.mxu0 0
    %787 = vmatpush1.bf16.msra.mxu0 %v771
    %788 = vmatprep.subr.bf16.mxu0 0
    %789 = vmatpush1.bf16.msra.mxu0 %v770
    %790 = vmatprep.subr.bf16.mxu0 0
    %791 = vmatpush1.bf16.msra.mxu0 %v769
    %792 = vmatprep.subr.bf16.mxu0 0
    %793 = vmatpush1.bf16.msra.mxu0 %v768
    %794 = vmatprep.subr.bf16.mxu0 0
    %795 = vmatpush1.bf16.msra.mxu0 %v767
    %796 = vmatprep.subr.bf16.mxu0 0
    %797 = vmatpush1.bf16.msra.mxu0 %v766
    %798 = vmatprep.subr.bf16.mxu0 0
    %799 = vmatpush2.bf16.msra.mxu0 0
    %800 = vmatprep.subr.bf16.mxu0 0
    %801 = vmatpush2.bf16.msra.mxu0 0
    %802 = vmatprep.subr.bf16.mxu0 0
    %803 = vmatpush2.bf16.msra.mxu0 0
    %804 = vmatprep.subr.bf16.mxu0 0
    %805 = vmatpush2.bf16.msra.mxu0 0
    %806 = vmatprep.subr.bf16.mxu0 0
    %807 = vmatpush2.bf16.msra.mxu0 0
    %808 = vmatprep.subr.bf16.mxu0 0
    %809 = vmatpush2.bf16.msra.mxu0 0
    %810 = vmatprep.subr.bf16.mxu0 0
    %811 = vmatpush2.bf16.msra.mxu0 0
    %812 = vmatprep.subr.bf16.mxu0 0
    %813 = vmatpush2.bf16.msra.mxu0 0
    %814 = vmatprep.mubr.bf16.mxu0 0
    %815 = vmatmul.mubr.bf16.gmra.mxu0 %v712
    %v816 = vpop.f32.mrf.mxu0
    %v817 = vadd.f32 %v733, %v816
    %v818 = vpop.f32.mrf.mxu0
    %v819 = vpop.f32.mrf.mxu0
    %v820 = vpop.f32.mrf.mxu0
    %821 = vdwg.mxu0
    %822 = vst [vmem:[#allocation5] sm:$0xff] %v817
    // Predicated region
    $region18: #{_forward.1} parent=1 // pred_check
      _
    $region19: #{_forward.1} parent=1 // pred_check_branch
      %824 = sbr.rel (0) target = $region21
    $region20: #{_forward.1} parent=1 // pred_region
      %s826 = ssub.s32 128, 128
      %827 = vsyncadd [#allocation4], %s826
      %s829 = sshll.u32 [#allocation5], 4
      %s830 = int_to_ptr.vmem [resolvable:$true] %s829
      %832 = dma.vmem_to_hbm [thread:$0]  %s830, 128, %s3, [#allocation4]
    $region21: #{_forward.1} parent=1 // pred_fallthru
      _
    // Predicated region
    $region22: #{_forward.1} parent=1 // pred_check
      _
    $region23: #{_forward.1} parent=1 // pred_check_branch
      %834 = sbr.rel (0) target = $region25
    $region24: #{_forward.1} parent=1 // pred_region
      %835 = dma.done [#allocation4], 128
    $region25: #{_forward.1} parent=1 // pred_fallthru
      _
    %836 = vsyncpa [#allocation3], 1
    %837 = vsyncpa [#allocation4], 1

</llo_original>
